<compile_context>
chip_gen: v6e
topology: v6e:2x2x1
jax: 0.10.0
libtpu: 0.0.40
codegen_flags: <defaults>
</compile_context>

<pallas_src>
import functools
import math

import jax
import jax.numpy as jnp
from jax.experimental import pallas as pl
from jax.experimental.pallas import tpu as pltpu


def _pick_tile(n, candidates=(512, 256, 128)):
    """Largest MXU-friendly tile that divides n, else full extent."""
    for c in candidates:
        if n % c == 0:
            return c
    return n


# ---------------------------------------------------------------------------
# Linear: y = x @ W + b   (x: (M, K) f32, W: (K, N) bf16, b: (1, N) f32)
# ---------------------------------------------------------------------------
def _linear_kernel(x_ref, w_ref, b_ref, o_ref):
    x = x_ref[...].astype(jnp.bfloat16)          # bf16 operands for the MXU
    acc = jnp.dot(x, w_ref[...], preferred_element_type=jnp.float32)
    o_ref[...] = (acc + b_ref[...]).astype(o_ref.dtype)


def _linear(x, w_bf16, b):
    M, K = x.shape
    N = w_bf16.shape[1]
    TM = _pick_tile(M)

    flops = 2 * M * K * N
    bytes_accessed = M * K * 4 + K * N * 2 + N * 4 + M * N * 4

    return pl.pallas_call(
        _linear_kernel,
        out_shape=jax.ShapeDtypeStruct((M, N), jnp.float32),
        grid_spec=pltpu.PrefetchScalarGridSpec(
            num_scalar_prefetch=0,
            grid=(M // TM,),
            in_specs=[
                pl.BlockSpec((TM, K), lambda i: (i, 0)),
                pl.BlockSpec((K, N), lambda i: (0, 0)),   # weight resident
                pl.BlockSpec((1, N), lambda i: (0, 0)),
            ],
            out_specs=pl.BlockSpec((TM, N), lambda i: (i, 0)),
        ),
        compiler_params=pltpu.CompilerParams(
            dimension_semantics=("parallel",),
            vmem_limit_bytes=32 * 1024 * 1024,
        ),
        cost_estimate=pl.CostEstimate(
            flops=flops, transcendentals=0, bytes_accessed=bytes_accessed),
    )(x, w_bf16, b)


# ---------------------------------------------------------------------------
# Attention core: per (batch, q-tile) grid step, all heads batched in one
# dot_general.  Inputs already head-split: (B, nH, L, d).
# ---------------------------------------------------------------------------
def _attn_kernel(q_ref, k_ref, v_ref, attn_ref, ctx_ref, *, inv_scale):
    # Fold 1/sqrt(d) into Q (single small f32 multiply), then bf16 for MXU.
    q = (q_ref[0] * inv_scale).astype(jnp.bfloat16)     # (nH, TQ, d)
    k = k_ref[0].astype(jnp.bfloat16)                   # (nH, Lk, d)
    v = v_ref[0].astype(jnp.bfloat16)                   # (nH, Lk, d)

    # Batched over heads; contraction on the last dim (no explicit k.T).
    energy = jnp.einsum("hqd,hkd->hqk", q, k,
                        preferred_element_type=jnp.float32)  # (nH, TQ, Lk)

    # Numerically-stable softmax in f32; reciprocal instead of a divide.
    m = jnp.max(energy, axis=-1, keepdims=True)
    e = jnp.exp(energy - m)
    denom = jnp.sum(e, axis=-1, keepdims=True)
    attn = e * pl.reciprocal(denom, approx=True)

    attn_ref[0] = attn.astype(attn_ref.dtype)

    # TODO(synk): training-mode dropout on attention weights (pltpu.prng_*)
    # is intentionally omitted; eval-mode dropout is identity.
    ctx = jnp.einsum("hqk,hkd->hqd", attn.astype(jnp.bfloat16), v,
                     preferred_element_type=jnp.float32)     # (nH, TQ, d)
    ctx_ref[0] = ctx.astype(ctx_ref.dtype)


def _attention_core(qh, kh, vh, *, head_dim):
    B, nH, Lq, d = qh.shape
    Lk = kh.shape[2]
    TQ = _pick_tile(Lq, (256, 128))
    inv_scale = 1.0 / math.sqrt(head_dim)

    flops = 4 * B * nH * Lq * Lk * d           # QK^T + attn@V
    transcendentals = B * nH * Lq * Lk         # exp
    bytes_accessed = ((qh.size + kh.size + vh.size) * 4
                      + B * nH * Lq * Lk * 4 + B * nH * Lq * d * 4)

    kernel = functools.partial(_attn_kernel, inv_scale=inv_scale)

    attn, ctx = pl.pallas_call(
        kernel,
        out_shape=(
            jax.ShapeDtypeStruct((B, nH, Lq, Lk), jnp.float32),
            jax.ShapeDtypeStruct((B, nH, Lq, d), jnp.float32),
        ),
        grid_spec=pltpu.PrefetchScalarGridSpec(
            num_scalar_prefetch=0,
            grid=(B, Lq // TQ),
            in_specs=[
                pl.BlockSpec((1, nH, TQ, d), lambda b, qi: (b, 0, qi, 0)),
                pl.BlockSpec((1, nH, Lk, d), lambda b, qi: (b, 0, 0, 0)),
                pl.BlockSpec((1, nH, Lk, d), lambda b, qi: (b, 0, 0, 0)),
            ],
            out_specs=[
                pl.BlockSpec((1, nH, TQ, Lk), lambda b, qi: (b, 0, qi, 0)),
                pl.BlockSpec((1, nH, TQ, d), lambda b, qi: (b, 0, qi, 0)),
            ],
        ),
        compiler_params=pltpu.CompilerParams(
            dimension_semantics=("parallel", "parallel"),
            vmem_limit_bytes=32 * 1024 * 1024,
        ),
        cost_estimate=pl.CostEstimate(
            flops=flops, transcendentals=transcendentals,
            bytes_accessed=bytes_accessed),
    )(qh, kh, vh)
    return attn, ctx


# ---------------------------------------------------------------------------
# Full forward pass
# ---------------------------------------------------------------------------
def multi_head_attention(query, key, value, params, *, n_heads):
    """query/key/value: (B, L, H) f32. Returns (out (B,Lq,H), attn (B,nH,Lq,Lk))."""
    B, Lq, H = query.shape
    Lk = key.shape[1]
    assert H % n_heads == 0
    d = H // n_heads

    # Cast weights to bf16 once (MXU-native, halves resident weight VMEM).
    wq = params["wq"].astype(jnp.bfloat16)
    wk = params["wk"].astype(jnp.bfloat16)
    wv = params["wv"].astype(jnp.bfloat16)
    wo = params["wo"].astype(jnp.bfloat16)
    bq, bk, bv, bo = params["bq"], params["bk"], params["bv"], params["bo"]

    # Projections with batch folded into the matmul M dimension.
    q = _linear(query.reshape(B * Lq, H), wq, bq)
    k = _linear(key.reshape(B * Lk, H), wk, bk)
    v = _linear(value.reshape(B * Lk, H), wv, bv)

    # Head split outside the kernel (layout plumbing handled by XLA).
    qh = q.reshape(B, Lq, n_heads, d).transpose(0, 2, 1, 3)
    kh = k.reshape(B, Lk, n_heads, d).transpose(0, 2, 1, 3)
    vh = v.reshape(B, Lk, n_heads, d).transpose(0, 2, 1, 3)

    # TODO(synk): optional attention mask (mask != None path) not implemented.
    attn, ctx = _attention_core(qh, kh, vh, head_dim=d)

    # Merge heads and apply the output projection (again batch-folded M).
    x = ctx.transpose(0, 2, 1, 3).reshape(B * Lq, H)
    out = _linear(x, wo, bo).reshape(B, Lq, H)
    return out, attn


# ---------------------------------------------------------------------------
# Pure-JAX f32 reference (mirrors the PyTorch module semantics)
# ---------------------------------------------------------------------------
def _reference(query, key, value, params, *, n_heads):
    B, Lq, H = query.shape
    d = H // n_heads

    def proj(x, w, b):
        return x @ w + b[0]

    q = proj(query, params["wq"], params["bq"])
    k = proj(key, params["wk"], params["bk"])
    v = proj(value, params["wv"], params["bv"])

    def split(x):
        return x.reshape(B, -1, n_heads, d).transpose(0, 2, 1, 3)

    qh, kh, vh = split(q), split(k), split(v)
    energy = jnp.einsum("bhqd,bhkd->bhqk", qh, kh) / jnp.sqrt(jnp.float32(d))
    attn = jax.nn.softmax(energy, axis=-1)
    x = jnp.einsum("bhqk,bhkd->bhqd", attn, vh)
    x = x.transpose(0, 2, 1, 3).reshape(B, -1, H)
    out = proj(x, params["wo"], params["bo"])
    return out, attn


if __name__ == "__main__":
    B, L, H, NH = 2, 8, 32, 4
    key0 = jax.random.PRNGKey(0)
    ks = jax.random.split(key0, 12)

    query = jax.random.normal(ks[0], (B, L, H), jnp.float32)
    key_in = jax.random.normal(ks[1], (B, L, H), jnp.float32)
    value = jax.random.normal(ks[2], (B, L, H), jnp.float32)

    def init_linear(kw, kb):
        # deterministic small-scale init (synthetic weights, not a checkpoint)
        w = jax.random.normal(kw, (H, H), jnp.float32) * 0.05
        b = jax.random.normal(kb, (1, H), jnp.float32) * 0.05
        return w, b

    wq, bq = init_linear(ks[3], ks[4])
    wk, bk = init_linear(ks[5], ks[6])
    wv, bv = init_linear(ks[7], ks[8])
    wo, bo = init_linear(ks[9], ks[10])
    params = dict(wq=wq, bq=bq, wk=wk, bk=bk, wv=wv, bv=bv, wo=wo, bo=bo)

    mha = jax.jit(functools.partial(multi_head_attention, n_heads=NH))
    out, attn = mha(query, key_in, value, params)
    out = jax.block_until_ready(out)
    attn = jax.block_until_ready(attn)

    ref_out, ref_attn = _reference(query, key_in, value, params, n_heads=NH)
    assert out.shape == (B, L, H) and attn.shape == (B, NH, L, L)
    # bf16 MXU operands -> compare against the f32 reference at bf16 tolerance
    assert jnp.allclose(out, ref_out, atol=2e-2, rtol=2e-2)
    assert jnp.allclose(attn, ref_attn, atol=2e-2, rtol=2e-2)

    print("KERNEL_OK")
</pallas_src>

<mosaic_0001>
module attributes {stable_mosaic.version = 11 : i64} {
  func.func @_linear_kernel(%arg0: i32, %arg1: memref<16x32xf32, #tpu.memory_space<vmem>>, %arg2: memref<32x32xbf16, #tpu.memory_space<vmem>>, %arg3: memref<1x32xf32, #tpu.memory_space<vmem>>, %arg4: memref<16x32xf32, #tpu.memory_space<vmem>>) attributes {dimension_semantics = [#tpu.dimension_semantics<parallel>], iteration_bounds = array<i64: 1>, scalar_prefetch = 0 : i64, scratch_operands = 0 : i64, tpu.core_type = #tpu.core_type<tc>, window_params = [{transform_indices = @transform_0, window_bounds = array<i64: 16, 32>}, {pipeline_mode = #tpu.pipeline_mode<synchronous>, transform_indices = @transform_1, window_bounds = array<i64: 32, 32>}, {pipeline_mode = #tpu.pipeline_mode<synchronous>, transform_indices = @transform_2, window_bounds = array<i64: 1, 32>}, {transform_indices = @transform_3, window_bounds = array<i64: 16, 32>}]} {
    %c0 = arith.constant 0 : index
    %c0_0 = arith.constant 0 : index
    %0 = vector.load %arg1[%c0, %c0_0] : memref<16x32xf32, #tpu.memory_space<vmem>>, vector<16x32xf32>
    %1 = arith.truncf %0 : vector<16x32xf32> to vector<16x32xbf16>
    %c0_1 = arith.constant 0 : index
    %c0_2 = arith.constant 0 : index
    %2 = vector.load %arg2[%c0_1, %c0_2] : memref<32x32xbf16, #tpu.memory_space<vmem>>, vector<32x32xbf16>
    %cst = arith.constant dense<0.000000e+00> : vector<16x32xf32>
    %3 = tpu.matmul %1, %2, %cst {dimension_numbers = #tpu.dot_dimension_numbers<[1], [0], [0], [1], [0, 0, 1, 1], [], []>} : vector<16x32xbf16>, vector<32x32xbf16>, vector<16x32xf32> -> vector<16x32xf32>
    %c0_3 = arith.constant 0 : index
    %c0_4 = arith.constant 0 : index
    %4 = vector.load %arg3[%c0_3, %c0_4] : memref<1x32xf32, #tpu.memory_space<vmem>>, vector<1x32xf32>
    %5 = vector.broadcast %4 : vector<1x32xf32> to vector<16x32xf32>
    %6 = arith.addf %3, %5 : vector<16x32xf32>
    %c0_5 = arith.constant 0 : index
    %c0_6 = arith.constant 0 : index
    %7 = vector.load %arg4[%c0_5, %c0_6] : memref<16x32xf32, #tpu.memory_space<vmem>>, vector<16x32xf32>
    tpu.vector_store %arg4[%c0_5, %c0_6], %6 {strides = array<i32>} : memref<16x32xf32, #tpu.memory_space<vmem>>, vector<16x32xf32>,
    return
  }
  func.func @transform_0(%arg0: i32) -> (i32, i32) {
    %c0_i32 = arith.constant 0 : i32
    %c0_i32_0 = arith.constant 0 : i32
    return %arg0, %c0_i32 : i32, i32
  }
  func.func @transform_1(%arg0: i32) -> (i32, i32) {
    %c0_i32 = arith.constant 0 : i32
    %c0_i32_0 = arith.constant 0 : i32
    %c0_i32_1 = arith.constant 0 : i32
    return %c0_i32, %c0_i32_0 : i32, i32
  }
  func.func @transform_2(%arg0: i32) -> (i32, i32) {
    %c0_i32 = arith.constant 0 : i32
    %c0_i32_0 = arith.constant 0 : i32
    %c0_i32_1 = arith.constant 0 : i32
    return %c0_i32, %c0_i32_0 : i32, i32
  }
  func.func @transform_3(%arg0: i32) -> (i32, i32) {
    %c0_i32 = arith.constant 0 : i32
    %c0_i32_0 = arith.constant 0 : i32
    return %arg0, %c0_i32 : i32, i32
  }
}

module attributes {stable_mosaic.version = 11 : i64} {
  func.func @_attn_kernel(%arg0: i32, %arg1: i32, %arg2: memref<1x4x8x8xf32, #tpu.memory_space<vmem>>, %arg3: memref<1x4x8x8xf32, #tpu.memory_space<vmem>>, %arg4: memref<1x4x8x8xf32, #tpu.memory_space<vmem>>, %arg5: memref<1x4x8x8xf32, #tpu.memory_space<vmem>>, %arg6: memref<1x4x8x8xf32, #tpu.memory_space<vmem>>) attributes {dimension_semantics = [#tpu.dimension_semantics<parallel>, #tpu.dimension_semantics<parallel>], iteration_bounds = array<i64: 2, 1>, scalar_prefetch = 0 : i64, scratch_operands = 0 : i64, tpu.core_type = #tpu.core_type<tc>, window_params = [{transform_indices = @transform_0, window_bounds = array<i64: 1, 4, 8, 8>}, {transform_indices = @transform_1, window_bounds = array<i64: 1, 4, 8, 8>}, {transform_indices = @transform_2, window_bounds = array<i64: 1, 4, 8, 8>}, {transform_indices = @transform_3, window_bounds = array<i64: 1, 4, 8, 8>}, {transform_indices = @transform_4, window_bounds = array<i64: 1, 4, 8, 8>}]} {
    %c0 = arith.constant 0 : index
    %c0_0 = arith.constant 0 : index
    %c0_1 = arith.constant 0 : index
    %c0_2 = arith.constant 0 : index
    %0 = vector.load %arg2[%c0, %c0_0, %c0_1, %c0_2] : memref<1x4x8x8xf32, #tpu.memory_space<vmem>>, vector<1x4x8x8xf32>
    %1 = vector.shape_cast %0 : vector<1x4x8x8xf32> to vector<4x8x8xf32>
    %cst = arith.constant 0.353553385 : f32
    %2 = vector.broadcast %cst : f32 to vector<4x8x8xf32>
    %3 = arith.mulf %1, %2 : vector<4x8x8xf32>
    %4 = arith.truncf %3 : vector<4x8x8xf32> to vector<4x8x8xbf16>
    %c0_3 = arith.constant 0 : index
    %c0_4 = arith.constant 0 : index
    %c0_5 = arith.constant 0 : index
    %c0_6 = arith.constant 0 : index
    %5 = vector.load %arg3[%c0_3, %c0_4, %c0_5, %c0_6] : memref<1x4x8x8xf32, #tpu.memory_space<vmem>>, vector<1x4x8x8xf32>
    %6 = vector.shape_cast %5 : vector<1x4x8x8xf32> to vector<4x8x8xf32>
    %7 = arith.truncf %6 : vector<4x8x8xf32> to vector<4x8x8xbf16>
    %c0_7 = arith.constant 0 : index
    %c0_8 = arith.constant 0 : index
    %c0_9 = arith.constant 0 : index
    %c0_10 = arith.constant 0 : index
    %8 = vector.load %arg4[%c0_7, %c0_8, %c0_9, %c0_10] : memref<1x4x8x8xf32, #tpu.memory_space<vmem>>, vector<1x4x8x8xf32>
    %9 = vector.shape_cast %8 : vector<1x4x8x8xf32> to vector<4x8x8xf32>
    %10 = arith.truncf %9 : vector<4x8x8xf32> to vector<4x8x8xbf16>
    "tpu.trace_start"() <{level = 10 : i32, message = "hqd,hkd->hqk"}> : () -> ()
    %cst_11 = arith.constant dense<0.000000e+00> : vector<4x8x8xf32>
    %11 = tpu.matmul %4, %7, %cst_11 {dimension_numbers = #tpu.dot_dimension_numbers<[2], [2], [1], [1], [0, 0, 0, 1, 1, 1], [0], [0]>} : vector<4x8x8xbf16>, vector<4x8x8xbf16>, vector<4x8x8xf32> -> vector<4x8x8xf32>
    "tpu.trace_stop"() : () -> ()
    %cst_12 = arith.constant dense<0xFF800000> : vector<4x8xf32>
    %12 = vector.multi_reduction <maximumf>, %11, %cst_12 [2] : vector<4x8x8xf32> to vector<4x8xf32>
    %13 = vector.shape_cast %12 : vector<4x8xf32> to vector<4x8x1xf32>
    %14 = vector.broadcast %13 : vector<4x8x1xf32> to vector<4x8x8xf32>
    %15 = arith.subf %11, %14 : vector<4x8x8xf32>
    %16 = math.exp %15 : vector<4x8x8xf32>
    %cst_13 = arith.constant dense<0.000000e+00> : vector<4x8xf32>
    %17 = vector.multi_reduction <add>, %16, %cst_13 [2] : vector<4x8x8xf32> to vector<4x8xf32>
    %18 = vector.shape_cast %17 : vector<4x8xf32> to vector<4x8x1xf32>
    %19 = tpu.reciprocal %18 {approx = true} : vector<4x8x1xf32> -> vector<4x8x1xf32>
    %20 = vector.broadcast %19 : vector<4x8x1xf32> to vector<4x8x8xf32>
    %21 = arith.mulf %16, %20 : vector<4x8x8xf32>
    %c0_14 = arith.constant 0 : index
    %c0_15 = arith.constant 0 : index
    %c0_16 = arith.constant 0 : index
    %c0_17 = arith.constant 0 : index
    %22 = vector.load %arg5[%c0_14, %c0_15, %c0_16, %c0_17] : memref<1x4x8x8xf32, #tpu.memory_space<vmem>>, vector<1x4x8x8xf32>
    %23 = vector.shape_cast %22 : vector<1x4x8x8xf32> to vector<4x8x8xf32>
    %24 = vector.shape_cast %21 : vector<4x8x8xf32> to vector<1x4x8x8xf32>
    tpu.vector_store %arg5[%c0_14, %c0_15, %c0_16, %c0_17], %24 {strides = array<i32>} : memref<1x4x8x8xf32, #tpu.memory_space<vmem>>, vector<1x4x8x8xf32>,
    %25 = arith.truncf %21 : vector<4x8x8xf32> to vector<4x8x8xbf16>
    "tpu.trace_start"() <{level = 10 : i32, message = "hqk,hkd->hqd"}> : () -> ()
    %cst_18 = arith.constant dense<0.000000e+00> : vector<4x8x8xf32>
    %26 = tpu.matmul %25, %10, %cst_18 {dimension_numbers = #tpu.dot_dimension_numbers<[2], [1], [1], [2], [0, 0, 0, 1, 1, 2], [0], [0]>} : vector<4x8x8xbf16>, vector<4x8x8xbf16>, vector<4x8x8xf32> -> vector<4x8x8xf32>
    "tpu.trace_stop"() : () -> ()
    %c0_19 = arith.constant 0 : index
    %c0_20 = arith.constant 0 : index
    %c0_21 = arith.constant 0 : index
    %c0_22 = arith.constant 0 : index
    %27 = vector.load %arg6[%c0_19, %c0_20, %c0_21, %c0_22] : memref<1x4x8x8xf32, #tpu.memory_space<vmem>>, vector<1x4x8x8xf32>
    %28 = vector.shape_cast %27 : vector<1x4x8x8xf32> to vector<4x8x8xf32>
    %29 = vector.shape_cast %26 : vector<4x8x8xf32> to vector<1x4x8x8xf32>
    tpu.vector_store %arg6[%c0_19, %c0_20, %c0_21, %c0_22], %29 {strides = array<i32>} : memref<1x4x8x8xf32, #tpu.memory_space<vmem>>, vector<1x4x8x8xf32>,
    return
  }
  func.func @transform_0(%arg0: i32, %arg1: i32) -> (i32, i32, i32, i32) {
    %c0_i32 = arith.constant 0 : i32
    %c0_i32_0 = arith.constant 0 : i32
    %c0_i32_1 = arith.constant 0 : i32
    return %arg0, %c0_i32, %arg1, %c0_i32_0 : i32, i32, i32, i32
  }
  func.func @transform_1(%arg0: i32, %arg1: i32) -> (i32, i32, i32, i32) {
    %c0_i32 = arith.constant 0 : i32
    %c0_i32_0 = arith.constant 0 : i32
    %c0_i32_1 = arith.constant 0 : i32
    %c0_i32_2 = arith.constant 0 : i32
    return %arg0, %c0_i32, %c0_i32_0, %c0_i32_1 : i32, i32, i32, i32
  }
  func.func @transform_2(%arg0: i32, %arg1: i32) -> (i32, i32, i32, i32) {
    %c0_i32 = arith.constant 0 : i32
    %c0_i32_0 = arith.constant 0 : i32
    %c0_i32_1 = arith.constant 0 : i32
    %c0_i32_2 = arith.constant 0 : i32
    return %arg0, %c0_i32, %c0_i32_0, %c0_i32_1 : i32, i32, i32, i32
  }
  func.func @transform_3(%arg0: i32, %arg1: i32) -> (i32, i32, i32, i32) {
    %c0_i32 = arith.constant 0 : i32
    %c0_i32_0 = arith.constant 0 : i32
    %c0_i32_1 = arith.constant 0 : i32
    return %arg0, %c0_i32, %arg1, %c0_i32_0 : i32, i32, i32, i32
  }
  func.func @transform_4(%arg0: i32, %arg1: i32) -> (i32, i32, i32, i32) {
    %c0_i32 = arith.constant 0 : i32
    %c0_i32_0 = arith.constant 0 : i32
    %c0_i32_1 = arith.constant 0 : i32
    return %arg0, %c0_i32, %arg1, %c0_i32_0 : i32, i32, i32, i32
  }
}

module attributes {stable_mosaic.version = 11 : i64} {
  func.func @_linear_kernel(%arg0: i32, %arg1: memref<16x32xf32, #tpu.memory_space<vmem>>, %arg2: memref<32x32xbf16, #tpu.memory_space<vmem>>, %arg3: memref<1x32xf32, #tpu.memory_space<vmem>>, %arg4: memref<16x32xf32, #tpu.memory_space<vmem>>) attributes {dimension_semantics = [#tpu.dimension_semantics<parallel>], iteration_bounds = array<i64: 1>, scalar_prefetch = 0 : i64, scratch_operands = 0 : i64, tpu.core_type = #tpu.core_type<tc>, window_params = [{transform_indices = @transform_0, window_bounds = array<i64: 16, 32>}, {pipeline_mode = #tpu.pipeline_mode<synchronous>, transform_indices = @transform_1, window_bounds = array<i64: 32, 32>}, {pipeline_mode = #tpu.pipeline_mode<synchronous>, transform_indices = @transform_2, window_bounds = array<i64: 1, 32>}, {transform_indices = @transform_3, window_bounds = array<i64: 16, 32>}]} {
    %c0 = arith.constant 0 : index
    %c0_0 = arith.constant 0 : index
    %0 = vector.load %arg1[%c0, %c0_0] : memref<16x32xf32, #tpu.memory_space<vmem>>, vector<16x32xf32>
    %1 = arith.truncf %0 : vector<16x32xf32> to vector<16x32xbf16>
    %c0_1 = arith.constant 0 : index
    %c0_2 = arith.constant 0 : index
    %2 = vector.load %arg2[%c0_1, %c0_2] : memref<32x32xbf16, #tpu.memory_space<vmem>>, vector<32x32xbf16>
    %cst = arith.constant dense<0.000000e+00> : vector<16x32xf32>
    %3 = tpu.matmul %1, %2, %cst {dimension_numbers = #tpu.dot_dimension_numbers<[1], [0], [0], [1], [0, 0, 1, 1], [], []>} : vector<16x32xbf16>, vector<32x32xbf16>, vector<16x32xf32> -> vector<16x32xf32>
    %c0_3 = arith.constant 0 : index
    %c0_4 = arith.constant 0 : index
    %4 = vector.load %arg3[%c0_3, %c0_4] : memref<1x32xf32, #tpu.memory_space<vmem>>, vector<1x32xf32>
    %5 = vector.broadcast %4 : vector<1x32xf32> to vector<16x32xf32>
    %6 = arith.addf %3, %5 : vector<16x32xf32>
    %c0_5 = arith.constant 0 : index
    %c0_6 = arith.constant 0 : index
    %7 = vector.load %arg4[%c0_5, %c0_6] : memref<16x32xf32, #tpu.memory_space<vmem>>, vector<16x32xf32>
    tpu.vector_store %arg4[%c0_5, %c0_6], %6 {strides = array<i32>} : memref<16x32xf32, #tpu.memory_space<vmem>>, vector<16x32xf32>,
    return
  }
  func.func @transform_0(%arg0: i32) -> (i32, i32) {
    %c0_i32 = arith.constant 0 : i32
    %c0_i32_0 = arith.constant 0 : i32
    return %arg0, %c0_i32 : i32, i32
  }
  func.func @transform_1(%arg0: i32) -> (i32, i32) {
    %c0_i32 = arith.constant 0 : i32
    %c0_i32_0 = arith.constant 0 : i32
    %c0_i32_1 = arith.constant 0 : i32
    return %c0_i32, %c0_i32_0 : i32, i32
  }
  func.func @transform_2(%arg0: i32) -> (i32, i32) {
    %c0_i32 = arith.constant 0 : i32
    %c0_i32_0 = arith.constant 0 : i32
    %c0_i32_1 = arith.constant 0 : i32
    return %c0_i32, %c0_i32_0 : i32, i32
  }
  func.func @transform_3(%arg0: i32) -> (i32, i32) {
    %c0_i32 = arith.constant 0 : i32
    %c0_i32_0 = arith.constant 0 : i32
    return %arg0, %c0_i32 : i32, i32
  }
}

</mosaic_0001>

<llo_original>
// kernel: multi_head_attention.6
$region0: #{multi_head_attention.6}
  #allocation0 [shape = 'u32[]', space=smem, size = 0x4, offset = 0x4, fixed_abs, tag = 'smem constant byte address 0x4 - core index']
  #allocation1 [shape = 'u32[144,128]{1,0:T(1,128)}', space=vmem, size = 0x12000, scoped, tag = 'internal scratch']
  %s0 = inlined_call_operand.vmem [shape: f32[16,32], index: 0, kind: input, shape index: {}]
  %s1 = inlined_call_operand.vmem [shape: bf16[32,32], index: 1, kind: input, shape index: {}]
  %s2 = inlined_call_operand.vmem [shape: f32[1,32], index: 2, kind: input, shape index: {}]
  %s3 = inlined_call_operand.vmem [shape: f32[16,32], index: 3, kind: output, shape index: {}]
  %s4 = sld [smem:[#allocation0]]
  $region22: #{multi_head_attention.6} parent=0
    _
  %s6 = ssub.s32 1, %s4
  %s7 = scalar_select 0, %s6, %s4
  // Predicated region
  $region2: #{multi_head_attention.6} parent=0 // pred_check
    _
  $region3: #{multi_head_attention.6} parent=0 // pred_check_branch
    %9 = sbr.rel (0) target = $region5
  $region4: #{multi_head_attention.6} parent=0 // pred_region
    _
  $region5: #{multi_head_attention.6} parent=0 // pred_fallthru
    _
  // Predicated region
  $region6: #{multi_head_attention.6} parent=0 // pred_check
    _
  $region7: #{multi_head_attention.6} parent=0 // pred_check_branch
    %11 = sbr.rel (0) target = $region9
  $region8: #{multi_head_attention.6} parent=0 // pred_region
    _
  $region9: #{multi_head_attention.6} parent=0 // pred_fallthru
    _
  // Predicated region
  $region10: #{multi_head_attention.6} parent=0 // pred_check
    _
  $region11: #{multi_head_attention.6} parent=0 // pred_check_branch
    %13 = sbr.rel (0) target = $region13
  $region12: #{multi_head_attention.6} parent=0 // pred_region
    _
  $region13: #{multi_head_attention.6} parent=0 // pred_fallthru
    _
  %v15 = vld [vmem:[%s0] sm:$0xff]
  %v16 = vld [vmem:[%s0 + $0x8] sm:$0xff]
  %v17 = vpack.c.bf16 %v16, %v15
  %v18 = vld [vmem:[%s1] sm:$0xf]
  %v19 = vld [vmem:[%s1 + $0x4] sm:$0xf]
  %v20 = vld [vmem:[%s1 + $0x8] sm:$0xf]
  %v21 = vld [vmem:[%s1 + $0xc] sm:$0xf]
  %v22 = vld [vmem:[%s2] sm:$0x1]
  %v24 = vlaneseq
  %v25 = vshrl.u32 %v24, 7
  %v26 = vsub.s32 0, %v25
  %v27 = vrot.slane %v22, %v26
  %v33 = vunpack.c.l.b16 %v18
  %v34 = vunpack.c.l.b16 %v19
  %v35 = vunpack.c.l.b16 %v20
  %v36 = vunpack.c.l.b16 %v21
  %v37 = vpack.c.b16 %v34, %v33
  %v38 = vpack.c.b16 %v36, %v35
  %vm41 = vcmask 261120
  %v43 = vsel %vm41, %v17, 0
  %45 = vmatprep.subr.bf16.mxu0 0
  %46 = vmatpush1.bf16.msra.mxu0 0
  %47 = vmatprep.subr.bf16.mxu0 0
  %48 = vmatpush1.bf16.msra.mxu0 0
  %49 = vmatprep.subr.bf16.mxu0 0
  %50 = vmatpush1.bf16.msra.mxu0 0
  %51 = vmatprep.subr.bf16.mxu0 0
  %52 = vmatpush1.bf16.msra.mxu0 0
  %53 = vmatprep.subr.bf16.mxu0 0
  %54 = vmatpush1.bf16.msra.mxu0 0
  %55 = vmatprep.subr.bf16.mxu0 0
  %56 = vmatpush1.bf16.msra.mxu0 0
  %57 = vmatprep.subr.bf16.mxu0 0
  %58 = vmatpush1.bf16.msra.mxu0 %v38
  %59 = vmatprep.subr.bf16.mxu0 0
  %60 = vmatpush1.bf16.msra.mxu0 %v37
  %61 = vmatprep.subr.bf16.mxu0 0
  %62 = vmatpush2.bf16.msra.mxu0 0
  %63 = vmatprep.subr.bf16.mxu0 0
  %64 = vmatpush2.bf16.msra.mxu0 0
  %65 = vmatprep.subr.bf16.mxu0 0
  %66 = vmatpush2.bf16.msra.mxu0 0
  %67 = vmatprep.subr.bf16.mxu0 0
  %68 = vmatpush2.bf16.msra.mxu0 0
  %69 = vmatprep.subr.bf16.mxu0 0
  %70 = vmatpush2.bf16.msra.mxu0 0
  %71 = vmatprep.subr.bf16.mxu0 0
  %72 = vmatpush2.bf16.msra.mxu0 0
  %73 = vmatprep.subr.bf16.mxu0 0
  %74 = vmatpush2.bf16.msra.mxu0 0
  %75 = vmatprep.subr.bf16.mxu0 0
  %76 = vmatpush2.bf16.msra.mxu0 0
  %77 = vmatprep.mubr.bf16.mxu0 0
  %78 = vmatmul.mubr.bf16.gmra.mxu0 %v43
  %v79 = vpop.f32.mrf.mxu0
  %v80 = vadd.f32 %v27, %v79
  %v81 = vpop.f32.mrf.mxu0
  %v82 = vpop.f32.mrf.mxu0
  %v83 = vadd.f32 %v27, %v82
  %v84 = vpop.f32.mrf.mxu0
  %85 = vdwg.mxu0
  %86 = vst.msk [vmem:[%s3] sm:$0xff] %vm41, %v80
  %87 = vst.msk [vmem:[%s3 + $0x8] sm:$0xff] %vm41, %v83
  // Predicated region
  $region14: #{multi_head_attention.6} parent=0 // pred_check
    _
  $region15: #{multi_head_attention.6} parent=0 // pred_check_branch
    %89 = sbr.rel (0) target = $region17
  $region16: #{multi_head_attention.6} parent=0 // pred_region
    _
  $region17: #{multi_head_attention.6} parent=0 // pred_fallthru
    _
  // Predicated region
  $region18: #{multi_head_attention.6} parent=0 // pred_check
    _
  $region19: #{multi_head_attention.6} parent=0 // pred_check_branch
    %91 = sbr.rel (0) target = $region21
  $region20: #{multi_head_attention.6} parent=0 // pred_region
    _
  $region21: #{multi_head_attention.6} parent=0 // pred_fallthru
    _

// kernel: multi_head_attention.9
$region0: #{multi_head_attention.9}
  #allocation0 [shape = 'u32[]', space=smem, size = 0x4, offset = 0x4, fixed_abs, tag = 'smem constant byte address 0x4 - core index']
  #allocation1 [shape = 'u32[144,128]{1,0:T(1,128)}', space=vmem, size = 0x12000, scoped, tag = 'internal scratch']
  %s0 = inlined_call_operand.vmem [shape: f32[16,32], index: 0, kind: input, shape index: {}]
  %s1 = inlined_call_operand.vmem [shape: bf16[32,32], index: 1, kind: input, shape index: {}]
  %s2 = inlined_call_operand.vmem [shape: f32[1,32], index: 2, kind: input, shape index: {}]
  %s3 = inlined_call_operand.hbm [shape: f32[16,32], index: 3, kind: output, shape index: {}]
  %s4 = sld [smem:[#allocation0]]
  $region22: #{multi_head_attention.9} parent=0
    _
  %s6 = ssub.s32 1, %s4
  %s7 = scalar_select 0, %s6, %s4
  $region1: #{multi_head_attention.9} parent=0
    #allocation2 [shape = 'u8[8192]{0}', space=vmem, size = 0x2000, scoped, tag = 'output window, operand 0, single buffered']
    #allocation3 [shape = 's32[1]{0}', space=sflag, size = 0x4, scoped, tag = 'scoped memory for multi_head_attention.9']
    %8 = vsyncpa [#allocation3], 0
    // Predicated region
    $region2: #{multi_head_attention.9} parent=1 // pred_check
      _
    $region3: #{multi_head_attention.9} parent=1 // pred_check_branch
      %10 = sbr.rel (0) target = $region5
    $region4: #{multi_head_attention.9} parent=1 // pred_region
      _
    $region5: #{multi_head_attention.9} parent=1 // pred_fallthru
      _
    // Predicated region
    $region6: #{multi_head_attention.9} parent=1 // pred_check
      _
    $region7: #{multi_head_attention.9} parent=1 // pred_check_branch
      %12 = sbr.rel (0) target = $region9
    $region8: #{multi_head_attention.9} parent=1 // pred_region
      _
    $region9: #{multi_head_attention.9} parent=1 // pred_fallthru
      _
    // Predicated region
    $region10: #{multi_head_attention.9} parent=1 // pred_check
      _
    $region11: #{multi_head_attention.9} parent=1 // pred_check_branch
      %14 = sbr.rel (0) target = $region13
    $region12: #{multi_head_attention.9} parent=1 // pred_region
      _
    $region13: #{multi_head_attention.9} parent=1 // pred_fallthru
      _
    %v16 = vld [vmem:[%s0] sm:$0xff]
    %v17 = vld [vmem:[%s0 + $0x8] sm:$0xff]
    %v18 = vpack.c.bf16 %v17, %v16
    %v19 = vld [vmem:[%s1] sm:$0xf]
    %v20 = vld [vmem:[%s1 + $0x4] sm:$0xf]
    %v21 = vld [vmem:[%s1 + $0x8] sm:$0xf]
    %v22 = vld [vmem:[%s1 + $0xc] sm:$0xf]
    %v23 = vld [vmem:[%s2] sm:$0x1]
    %v25 = vlaneseq
    %v26 = vshrl.u32 %v25, 7
    %v27 = vsub.s32 0, %v26
    %v28 = vrot.slane %v23, %v27
    %v34 = vunpack.c.l.b16 %v19
    %v35 = vunpack.c.l.b16 %v20
    %v36 = vunpack.c.l.b16 %v21
    %v37 = vunpack.c.l.b16 %v22
    %v38 = vpack.c.b16 %v35, %v34
    %v39 = vpack.c.b16 %v37, %v36
    %vm42 = vcmask 261120
    %v44 = vsel %vm42, %v18, 0
    %46 = vmatprep.subr.bf16.mxu0 0
    %47 = vmatpush1.bf16.msra.mxu0 0
    %48 = vmatprep.subr.bf16.mxu0 0
    %49 = vmatpush1.bf16.msra.mxu0 0
    %50 = vmatprep.subr.bf16.mxu0 0
    %51 = vmatpush1.bf16.msra.mxu0 0
    %52 = vmatprep.subr.bf16.mxu0 0
    %53 = vmatpush1.bf16.msra.mxu0 0
    %54 = vmatprep.subr.bf16.mxu0 0
    %55 = vmatpush1.bf16.msra.mxu0 0
    %56 = vmatprep.subr.bf16.mxu0 0
    %57 = vmatpush1.bf16.msra.mxu0 0
    %58 = vmatprep.subr.bf16.mxu0 0
    %59 = vmatpush1.bf16.msra.mxu0 %v39
    %60 = vmatprep.subr.bf16.mxu0 0
    %61 = vmatpush1.bf16.msra.mxu0 %v38
    %62 = vmatprep.subr.bf16.mxu0 0
    %63 = vmatpush2.bf16.msra.mxu0 0
    %64 = vmatprep.subr.bf16.mxu0 0
    %65 = vmatpush2.bf16.msra.mxu0 0
    %66 = vmatprep.subr.bf16.mxu0 0
    %67 = vmatpush2.bf16.msra.mxu0 0
    %68 = vmatprep.subr.bf16.mxu0 0
    %69 = vmatpush2.bf16.msra.mxu0 0
    %70 = vmatprep.subr.bf16.mxu0 0
    %71 = vmatpush2.bf16.msra.mxu0 0
    %72 = vmatprep.subr.bf16.mxu0 0
    %73 = vmatpush2.bf16.msra.mxu0 0
    %74 = vmatprep.subr.bf16.mxu0 0
    %75 = vmatpush2.bf16.msra.mxu0 0
    %76 = vmatprep.subr.bf16.mxu0 0
    %77 = vmatpush2.bf16.msra.mxu0 0
    %78 = vmatprep.mubr.bf16.mxu0 0
    %79 = vmatmul.mubr.bf16.gmra.mxu0 %v44
    %v80 = vpop.f32.mrf.mxu0
    %v81 = vadd.f32 %v28, %v80
    %v82 = vpop.f32.mrf.mxu0
    %v83 = vpop.f32.mrf.mxu0
    %v84 = vadd.f32 %v28, %v83
    %v85 = vpop.f32.mrf.mxu0
    %86 = vdwg.mxu0
    %87 = vst.msk [vmem:[#allocation2] sm:$0xff] %vm42, %v81
    %88 = vst.msk [vmem:[#allocation2 + $0x8] sm:$0xff] %vm42, %v84
    // Predicated region
    $region14: #{multi_head_attention.9} parent=1 // pred_check
      _
    $region15: #{multi_head_attention.9} parent=1 // pred_check_branch
      %90 = sbr.rel (0) target = $region17
    $region16: #{multi_head_attention.9} parent=1 // pred_region
      %s92 = ssub.s32 256, 256
      %93 = vsyncadd [#allocation3], %s92
      %s94 = sshll.u32 [#allocation2], 4
      %s95 = int_to_ptr.vmem [resolvable:$true] %s94
      %100 = dma.vmem_to_hbm [thread:$0]  %s95, 256, %s3, [#allocation3], 128, 128, 8
    $region17: #{multi_head_attention.9} parent=1 // pred_fallthru
      _
    // Predicated region
    $region18: #{multi_head_attention.9} parent=1 // pred_check
      _
    $region19: #{multi_head_attention.9} parent=1 // pred_check_branch
      %102 = sbr.rel (0) target = $region21
    $region20: #{multi_head_attention.9} parent=1 // pred_region
      %103 = dma.done [#allocation3], 256
    $region21: #{multi_head_attention.9} parent=1 // pred_fallthru
      _
    %104 = vsyncpa [#allocation3], 1

// kernel: multi_head_attention.8
$region0: #{multi_head_attention.8}
  #allocation0 [shape = 'u32[]', space=smem, size = 0x4, offset = 0x4, fixed_abs, tag = 'smem constant byte address 0x4 - core index']
  #allocation1 [shape = 'u32[144,128]{1,0:T(1,128)}', space=vmem, size = 0x12000, scoped, tag = 'internal scratch']
  %s0 = inlined_call_operand.vmem [shape: f32[2,4,8,8], index: 0, kind: input, shape index: {}]
  %s1 = inlined_call_operand.vmem [shape: f32[2,4,8,8], index: 1, kind: input, shape index: {}]
  %s2 = inlined_call_operand.vmem [shape: f32[2,4,8,8], index: 2, kind: input, shape index: {}]
  %s3 = inlined_call_operand.hbm [shape: f32[2,4,8,8], index: 3, kind: output, shape index: {0}]
  %s4 = inlined_call_operand.vmem [shape: f32[2,4,8,8], index: 4, kind: output, shape index: {1}]
  %5 = xla_tuple %s3, %s4
  %s6 = sld [smem:[#allocation0]]
  $region53: #{multi_head_attention.8} parent=0
    _
  %s8 = ssub.s32 1, %s6
  %s9 = scalar_select 0, %s8, %s6
  $region1: #{multi_head_attention.8} parent=0
    #allocation2 [shape = 'u8[32768]{0}', space=vmem, size = 0x8000, scoped, tag = 'output window, operand 0']
    #allocation3 [shape = 's32[2]{0}', space=sflag, size = 0x8, scoped, tag = 'scoped memory for multi_head_attention.8']
    %10 = vsyncpa [#allocation3], 0
    %s11 = scalar_lea.sflag [#allocation3], 1
    %12 = vsyncpa %s11, 0
    loop: start=0, step=1, limit=4
    $region2: #{multi_head_attention.8} parent=1 // loop_pre_header
      _
    $region3: #{multi_head_attention.8} parent=1 // loop_header
      %s14 = sphi 0, %s18
      %p15 = scmp.ge.s32.totalorder %s14, 4
      %s21 = sphi 0, %s33
      %s22 = sphi 0, %s29
      %s23 = sphi 0, %s21
      %s24 = sphi 0, %s22
      %s25 = sphi 0, %s23
      %s26 = sphi 0, %s24
      %s38 = sphi 0, %s40
      %s41 = sphi 0, %s38
      %s42 = sphi 0, %s41
      %s58 = sphi 0, %s42
      %s64 = sphi 0, %s66
      %s67 = sphi 0, %s64
      %s68 = sphi 0, %s67
      %s84 = sphi 0, %s68
      %s90 = sphi 0, %s92
      %s93 = sphi 0, %s90
      %s94 = sphi 0, %s93
      %s110 = sphi 0, %s94
      %s118 = sphi 0, %s120
      %s121 = sphi 0, %s118
      %s122 = sphi 0, %s121
      %s138 = sphi 0, %s122
      %s146 = sphi 0, %s148
      %s149 = sphi 0, %s146
      %s150 = sphi 0, %s149
      %s166 = sphi 0, %s150
    $region4: #{multi_head_attention.8} parent=1 // loop_header_branch
      %17 = sbr.rel (%p15) target = $region8
    $region5: #{multi_head_attention.8} parent=1 // loop_body
      %s19 = ssub.s32 %s14, 1
      %s20 = ssub.s32 %s14, 2
      %s27 = sadd.s32 1, %s22
      %p28 = scmp.ge.s32.totalorder %s27, 1
      %s29 = scalar_select %p28, 0, %s27
      %s30 = sadd.s32 1, %s21
      %s31 = scalar_select %p28, %s30, %s21
      %p32 = scmp.ge.s32.totalorder %s31, 2
      %s33 = scalar_select %p32, 0, %s31
      %s34 = ssub.s32 %s21, %s33
      %s35 = ssub.s32 %s22, %s29
      %s36 = sor.u32 %s34, %s35
      %p37 = scmp.eq.s32.totalorder %s36, 0
      %s39 = sadd.s32 %s38, 1
      %s40 = scalar_select %p37, %s38, %s39
      %p43 = pneg %p37
      %p44 = scmp.eq.s32.totalorder %s14, 1
      %p45 = por %p43, %p44
      %p46 = scmp.ne.s32.totalorder %s38, %s41
      %p47 = scmp.eq.s32.totalorder %s14, 0
      %p48 = por %p46, %p47
      %p49 = scmp.ne.s32.totalorder %s38, %s41
      %p50 = scmp.eq.s32.totalorder %s19, 1
      %p51 = por %p49, %p50
      %p52 = scmp.ne.s32.totalorder %s41, %s42
      %p53 = scmp.eq.s32.totalorder %s19, 0
      %p54 = por %p52, %p53
      %p55 = scmp.ne.s32.totalorder %s41, %s42
      %p56 = scmp.eq.s32.totalorder %s20, 1
      %p57 = por %p55, %p56
      %p59 = scmp.ne.s32.totalorder %s42, %s58
      %p60 = scmp.eq.s32.totalorder %s20, 0
      %p61 = por %p59, %p60
      %s62 = ssub.s32 %s21, %s33
      %p63 = scmp.eq.s32.totalorder %s62, 0
      %s65 = sadd.s32 %s64, 1
      %s66 = scalar_select %p63, %s64, %s65
      %p69 = pneg %p63
      %p70 = scmp.eq.s32.totalorder %s14, 1
      %p71 = por %p69, %p70
      %p72 = scmp.ne.s32.totalorder %s64, %s67
      %p73 = scmp.eq.s32.totalorder %s14, 0
      %p74 = por %p72, %p73
      %p75 = scmp.ne.s32.totalorder %s64, %s67
      %p76 = scmp.eq.s32.totalorder %s19, 1
      %p77 = por %p75, %p76
      %p78 = scmp.ne.s32.totalorder %s67, %s68
      %p79 = scmp.eq.s32.totalorder %s19, 0
      %p80 = por %p78, %p79
      %p81 = scmp.ne.s32.totalorder %s67, %s68
      %p82 = scmp.eq.s32.totalorder %s20, 1
      %p83 = por %p81, %p82
      %p85 = scmp.ne.s32.totalorder %s68, %s84
      %p86 = scmp.eq.s32.totalorder %s20, 0
      %p87 = por %p85, %p86
      %s88 = ssub.s32 %s21, %s33
      %p89 = scmp.eq.s32.totalorder %s88, 0
      %s91 = sadd.s32 %s90, 1
      %s92 = scalar_select %p89, %s90, %s91
      %p95 = pneg %p89
      %p96 = scmp.eq.s32.totalorder %s14, 1
      %p97 = por %p95, %p96
      %p98 = scmp.ne.s32.totalorder %s90, %s93
      %p99 = scmp.eq.s32.totalorder %s14, 0
      %p100 = por %p98, %p99
      %p101 = scmp.ne.s32.totalorder %s90, %s93
      %p102 = scmp.eq.s32.totalorder %s19, 1
      %p103 = por %p101, %p102
      %p104 = scmp.ne.s32.totalorder %s93, %s94
      %p105 = scmp.eq.s32.totalorder %s19, 0
      %p106 = por %p104, %p105
      %p107 = scmp.ne.s32.totalorder %s93, %s94
      %p108 = scmp.eq.s32.totalorder %s20, 1
      %p109 = por %p107, %p108
      %p111 = scmp.ne.s32.totalorder %s94, %s110
      %p112 = scmp.eq.s32.totalorder %s20, 0
      %p113 = por %p111, %p112
      %s114 = ssub.s32 %s21, %s33
      %s115 = ssub.s32 %s22, %s29
      %s116 = sor.u32 %s114, %s115
      %p117 = scmp.eq.s32.totalorder %s116, 0
      %s119 = sadd.s32 %s118, 1
      %s120 = scalar_select %p117, %s118, %s119
      %p123 = pneg %p117
      %p124 = scmp.eq.s32.totalorder %s14, 1
      %p125 = por %p123, %p124
      %p126 = scmp.ne.s32.totalorder %s118, %s121
      %p127 = scmp.eq.s32.totalorder %s14, 0
      %p128 = por %p126, %p127
      %p129 = scmp.ne.s32.totalorder %s118, %s121
      %p130 = scmp.eq.s32.totalorder %s19, 1
      %p131 = por %p129, %p130
      %p132 = scmp.ne.s32.totalorder %s121, %s122
      %p133 = scmp.eq.s32.totalorder %s19, 0
      %p134 = por %p132, %p133
      %p135 = scmp.ne.s32.totalorder %s121, %s122
      %p136 = scmp.eq.s32.totalorder %s20, 1
      %p137 = por %p135, %p136
      %p139 = scmp.ne.s32.totalorder %s122, %s138
      %p140 = scmp.eq.s32.totalorder %s20, 0
      %p141 = por %p139, %p140
      %s142 = ssub.s32 %s21, %s33
      %s143 = ssub.s32 %s22, %s29
      %s144 = sor.u32 %s142, %s143
      %p145 = scmp.eq.s32.totalorder %s144, 0
      %s147 = sadd.s32 %s146, 1
      %s148 = scalar_select %p145, %s146, %s147
      %p151 = pneg %p145
      %p152 = scmp.eq.s32.totalorder %s14, 1
      %p153 = por %p151, %p152
      %p154 = scmp.ne.s32.totalorder %s146, %s149
      %p155 = scmp.eq.s32.totalorder %s14, 0
      %p156 = por %p154, %p155
      %p157 = scmp.ne.s32.totalorder %s146, %s149
      %p158 = scmp.eq.s32.totalorder %s19, 1
      %p159 = por %p157, %p158
      %p160 = scmp.ne.s32.totalorder %s149, %s150
      %p161 = scmp.eq.s32.totalorder %s19, 0
      %p162 = por %p160, %p161
      %p163 = scmp.ne.s32.totalorder %s149, %s150
      %p164 = scmp.eq.s32.totalorder %s20, 1
      %p165 = por %p163, %p164
      %p167 = scmp.ne.s32.totalorder %s150, %s166
      %p168 = scmp.eq.s32.totalorder %s20, 0
      %p169 = por %p167, %p168
      %p170 = scmp.le.s32.totalorder 1, %s14
      %p171 = scmp.lt.s32.totalorder %s14, 3
      %p172 = pnand %p170, %p171
      %p173 = pneg %p172
      // Predicated region
      $region9: #{multi_head_attention.8} parent=5 // pred_check
        _
      $region10: #{multi_head_attention.8} parent=5 // pred_check_branch
        %175 = sbr.rel (%p172) target = $region12
      $region11: #{multi_head_attention.8} parent=5 // pred_region
        %s176 = ssub.s32 %s14, 1
      $region12: #{multi_head_attention.8} parent=5 // pred_fallthru
        _
      %p177 = scmp.lt.s32.totalorder %s14, 2
      // Predicated region
      $region13: #{multi_head_attention.8} parent=5 // pred_check
        %p178 = pneg %p177
      $region14: #{multi_head_attention.8} parent=5 // pred_check_branch
        %180 = sbr.rel (%p178) target = $region16
      $region15: #{multi_head_attention.8} parent=5 // pred_region
        // Predicated region
        $region17: #{multi_head_attention.8} parent=15 // pred_check
          %p181 = pneg %p48
        $region18: #{multi_head_attention.8} parent=15 // pred_check_branch
          %183 = sbr.rel (%p181) target = $region20
        $region19: #{multi_head_attention.8} parent=15 // pred_region
          %p184 = scmp.lt.s32.totalorder %s21, 1
          %s185 = scalar_select %p184, %s21, 1
          %p186 = scmp.lt.s32.totalorder %s22, 0
          %s187 = scalar_select %p186, %s22, 0
          %s188 = smul.addr %s185, 4
          %s189 = sadd.s32 %s187, %s188
          %s190 = smul.addr %s189, 8
          %s191 = scalar_lea.vmem %s0, %s190
        $region20: #{multi_head_attention.8} parent=15 // pred_fallthru
          _
        // Predicated region
        $region21: #{multi_head_attention.8} parent=15 // pred_check
          %p192 = pneg %p74
        $region22: #{multi_head_attention.8} parent=15 // pred_check_branch
          %194 = sbr.rel (%p192) target = $region24
        $region23: #{multi_head_attention.8} parent=15 // pred_region
          %p195 = scmp.lt.s32.totalorder %s21, 1
          %s196 = scalar_select %p195, %s21, 1
          %s197 = smul.addr %s196, 4
          %s198 = smul.addr %s197, 8
          %s199 = scalar_lea.vmem %s1, %s198
        $region24: #{multi_head_attention.8} parent=15 // pred_fallthru
          _
        // Predicated region
        $region25: #{multi_head_attention.8} parent=15 // pred_check
          %p200 = pneg %p100
        $region26: #{multi_head_attention.8} parent=15 // pred_check_branch
          %202 = sbr.rel (%p200) target = $region28
        $region27: #{multi_head_attention.8} parent=15 // pred_region
          %p203 = scmp.lt.s32.totalorder %s21, 1
          %s204 = scalar_select %p203, %s21, 1
          %s205 = smul.addr %s204, 4
          %s206 = smul.addr %s205, 8
          %s207 = scalar_lea.vmem %s2, %s206
        $region28: #{multi_head_attention.8} parent=15 // pred_fallthru
          _
      $region16: #{multi_head_attention.8} parent=5 // pred_fallthru
        _
      %p208 = scmp.le.s32.totalorder 1, %s14
      %p209 = scmp.lt.s32.totalorder %s14, 3
      %p210 = pnand %p208, %p209
      %p211 = pneg %p210
      // Predicated region
      $region29: #{multi_head_attention.8} parent=5 // pred_check
        _
      $region30: #{multi_head_attention.8} parent=5 // pred_check_branch
        %213 = sbr.rel (%p210) target = $region32
      $region31: #{multi_head_attention.8} parent=5 // pred_region
        %s214 = ssub.s32 %s14, 1
        %p215 = scmp.lt.s32.totalorder %s23, 1
        %s216 = scalar_select %p215, %s23, 1
        %p217 = scmp.lt.s32.totalorder %s24, 0
        %s218 = scalar_select %p217, %s24, 0
        %s219 = smul.addr %s216, 4
        %s220 = sadd.s32 %s218, %s219
        %s221 = smul.addr %s220, 8
        %s222 = scalar_lea.vmem %s0, %s221
        %p223 = pneg %p54
        %p224 = pneg %p51
        %p225 = scmp.lt.s32.totalorder %s23, 1
        %s226 = scalar_select %p225, %s23, 1
        %s227 = smul.addr %s226, 4
        %s228 = smul.addr %s227, 8
        %s229 = scalar_lea.vmem %s1, %s228
        %p230 = pneg %p80
        %p231 = pneg %p77
        %p232 = scmp.lt.s32.totalorder %s23, 1
        %s233 = scalar_select %p232, %s23, 1
        %s234 = smul.addr %s233, 4
        %s235 = smul.addr %s234, 8
        %s236 = scalar_lea.vmem %s2, %s235
        %p237 = pneg %p106
        %p238 = pneg %p103
        %p239 = pneg %p134
        %p240 = pneg %p131
        %s241 = sand.u32 %s121, 1
        %s242 = scalar_lea.sflag [#allocation3], %s241
        %s243 = sand.u32 %s121, 1
        %s244 = smul.addr %s243, 32
        %s245 = scalar_lea.vmem [#allocation2], %s244
        %p246 = pneg %p162
        %p247 = pneg %p159
        %p248 = scmp.lt.s32.totalorder %s23, 1
        %s249 = scalar_select %p248, %s23, 1
        %p250 = scmp.lt.s32.totalorder %s24, 0
        %s251 = scalar_select %p250, %s24, 0
        %s252 = smul.addr %s249, 4
        %s253 = sadd.s32 %s251, %s252
        %s254 = smul.addr %s253, 8
        %s255 = scalar_lea.vmem %s4, %s254
        %p256 = scmp.lt.s32.totalorder %s23, 1
        %s257 = scalar_select %p256, %s23, 1
        %p258 = scmp.lt.s32.totalorder %s24, 0
        %s259 = scalar_select %p258, %s24, 0
        %s260 = smul.addr %s257, 4
        %s261 = sadd.s32 %s259, %s260
        %s262 = smul.addr %s261, 8
        %s263 = scalar_lea.vmem %s0, %s262
        %p264 = scmp.lt.s32.totalorder %s23, 1
        %s265 = scalar_select %p264, %s23, 1
        %s266 = smul.addr %s265, 4
        %s267 = smul.addr %s266, 8
        %s268 = scalar_lea.vmem %s1, %s267
        %p269 = scmp.lt.s32.totalorder %s23, 1
        %s270 = scalar_select %p269, %s23, 1
        %s271 = smul.addr %s270, 4
        %s272 = smul.addr %s271, 8
        %s273 = scalar_lea.vmem %s2, %s272
        %p274 = scmp.lt.s32.totalorder %s23, 1
        %s275 = scalar_select %p274, %s23, 1
        %p276 = scmp.lt.s32.totalorder %s24, 0
        %s277 = scalar_select %p276, %s24, 0
        %s278 = smul.addr %s275, 4
        %s279 = sadd.s32 %s277, %s278
        %s280 = smul.addr %s279, 8
        %s281 = scalar_lea.vmem %s4, %s280
        %v283 = vld [vmem:[%s263] sm:$0xff]
        %v284 = vld [vmem:[%s263 + $0x8] sm:$0xff]
        %v285 = vld [vmem:[%s263 + $0x10] sm:$0xff]
        %v286 = vld [vmem:[%s263 + $0x18] sm:$0xff]
        %v287 = vmul.f32 %v283, 0.35355338
        %v288 = vmul.f32 %v284, 0.35355338
        %v289 = vmul.f32 %v285, 0.35355338
        %v290 = vmul.f32 %v286, 0.35355338
        %v291 = vpack.c.bf16 %v287, %v287
        %v292 = vpack.c.bf16 %v288, %v288
        %v293 = vpack.c.bf16 %v289, %v289
        %v294 = vpack.c.bf16 %v290, %v290
        %v295 = vld [vmem:[%s268] sm:$0xff]
        %v296 = vld [vmem:[%s268 + $0x8] sm:$0xff]
        %v297 = vld [vmem:[%s268 + $0x10] sm:$0xff]
        %v298 = vld [vmem:[%s268 + $0x18] sm:$0xff]
        %v299 = vpack.c.bf16 %v295, %v295
        %v300 = vpack.c.bf16 %v296, %v296
        %v301 = vpack.c.bf16 %v297, %v297
        %v302 = vpack.c.bf16 %v298, %v298
        %v303 = vld [vmem:[%s273] sm:$0xff]
        %v304 = vld [vmem:[%s273 + $0x8] sm:$0xff]
        %v305 = vld [vmem:[%s273 + $0x10] sm:$0xff]
        %v306 = vld [vmem:[%s273 + $0x18] sm:$0xff]
        %v307 = vpack.c.bf16 %v303, %v303
        %v308 = vpack.c.bf16 %v304, %v304
        %v309 = vpack.c.bf16 %v305, %v305
        %v310 = vpack.c.bf16 %v306, %v306
        %vm311 = vcmask 64512
        %v313 = vsel %vm311, %v291, 0
        %v316 = vsel %vm311, %v299, 0
        %318 = vmatprep.subr.bf16.mxu0 0
        %319 = vmatpush1.bf16.xpose.msra.mxu0 0
        %320 = vmatprep.subr.bf16.mxu0 0
        %321 = vmatpush1.bf16.xpose.msra.mxu0 0
        %322 = vmatprep.subr.bf16.mxu0 0
        %323 = vmatpush1.bf16.xpose.msra.mxu0 0
        %324 = vmatprep.subr.bf16.mxu0 0
        %325 = vmatpush1.bf16.xpose.msra.mxu0 0
        %326 = vmatprep.subr.bf16.mxu0 0
        %327 = vmatpush1.bf16.xpose.msra.mxu0 0
        %328 = vmatprep.subr.bf16.mxu0 0
        %329 = vmatpush1.bf16.xpose.msra.mxu0 0
        %330 = vmatprep.subr.bf16.mxu0 0
        %331 = vmatpush1.bf16.xpose.msra.mxu0 0
        %332 = vmatprep.subr.bf16.mxu0 0
        %333 = vmatpush1.bf16.xpose.msra.mxu0 %v316
        %334 = vmatprep.subr.bf16.mxu0 0
        %335 = vmatpush2.bf16.xpose.msra.mxu0 0
        %336 = vmatprep.subr.bf16.mxu0 0
        %337 = vmatpush2.bf16.xpose.msra.mxu0 0
        %338 = vmatprep.subr.bf16.mxu0 0
        %339 = vmatpush2.bf16.xpose.msra.mxu0 0
        %340 = vmatprep.subr.bf16.mxu0 0
        %341 = vmatpush2.bf16.xpose.msra.mxu0 0
        %342 = vmatprep.subr.bf16.mxu0 0
        %343 = vmatpush2.bf16.xpose.msra.mxu0 0
        %344 = vmatprep.subr.bf16.mxu0 0
        %345 = vmatpush2.bf16.xpose.msra.mxu0 0
        %346 = vmatprep.subr.bf16.mxu0 0
        %347 = vmatpush2.bf16.xpose.msra.mxu0 0
        %348 = vmatprep.subr.bf16.mxu0 0
        %349 = vmatpush2.bf16.xpose.msra.mxu0 0
        %350 = vmatprep.mubr.bf16.mxu0 0
        %351 = vmatmul.mubr.bf16.gmra.mxu0 %v313
        %v352 = vpop.f32.mrf.mxu0
        %v353 = vadd.f32 0.0, %v352
        %v354 = vpop.f32.mrf.mxu0
        %v355 = vpop.f32.mrf.mxu0
        %v356 = vpop.f32.mrf.mxu0
        %357 = vdwg.mxu0
        %v359 = vsel %vm311, %v292, 0
        %v362 = vsel %vm311, %v300, 0
        %364 = vmatprep.subr.bf16.mxu0 0
        %365 = vmatpush1.bf16.xpose.msra.mxu0 0
        %366 = vmatprep.subr.bf16.mxu0 0
        %367 = vmatpush1.bf16.xpose.msra.mxu0 0
        %368 = vmatprep.subr.bf16.mxu0 0
        %369 = vmatpush1.bf16.xpose.msra.mxu0 0
        %370 = vmatprep.subr.bf16.mxu0 0
        %371 = vmatpush1.bf16.xpose.msra.mxu0 0
        %372 = vmatprep.subr.bf16.mxu0 0
        %373 = vmatpush1.bf16.xpose.msra.mxu0 0
        %374 = vmatprep.subr.bf16.mxu0 0
        %375 = vmatpush1.bf16.xpose.msra.mxu0 0
        %376 = vmatprep.subr.bf16.mxu0 0
        %377 = vmatpush1.bf16.xpose.msra.mxu0 0
        %378 = vmatprep.subr.bf16.mxu0 0
        %379 = vmatpush1.bf16.xpose.msra.mxu0 %v362
        %380 = vmatprep.subr.bf16.mxu0 0
        %381 = vmatpush2.bf16.xpose.msra.mxu0 0
        %382 = vmatprep.subr.bf16.mxu0 0
        %383 = vmatpush2.bf16.xpose.msra.mxu0 0
        %384 = vmatprep.subr.bf16.mxu0 0
        %385 = vmatpush2.bf16.xpose.msra.mxu0 0
        %386 = vmatprep.subr.bf16.mxu0 0
        %387 = vmatpush2.bf16.xpose.msra.mxu0 0
        %388 = vmatprep.subr.bf16.mxu0 0
        %389 = vmatpush2.bf16.xpose.msra.mxu0 0
        %390 = vmatprep.subr.bf16.mxu0 0
        %391 = vmatpush2.bf16.xpose.msra.mxu0 0
        %392 = vmatprep.subr.bf16.mxu0 0
        %393 = vmatpush2.bf16.xpose.msra.mxu0 0
        %394 = vmatprep.subr.bf16.mxu0 0
        %395 = vmatpush2.bf16.xpose.msra.mxu0 0
        %396 = vmatprep.mubr.bf16.mxu0 0
        %397 = vmatmul.mubr.bf16.gmra.mxu0 %v359
        %v398 = vpop.f32.mrf.mxu0
        %v399 = vadd.f32 0.0, %v398
        %v400 = vpop.f32.mrf.mxu0
        %v401 = vpop.f32.mrf.mxu0
        %v402 = vpop.f32.mrf.mxu0
        %403 = vdwg.mxu0
        %v405 = vsel %vm311, %v293, 0
        %v408 = vsel %vm311, %v301, 0
        %410 = vmatprep.subr.bf16.mxu0 0
        %411 = vmatpush1.bf16.xpose.msra.mxu0 0
        %412 = vmatprep.subr.bf16.mxu0 0
        %413 = vmatpush1.bf16.xpose.msra.mxu0 0
        %414 = vmatprep.subr.bf16.mxu0 0
        %415 = vmatpush1.bf16.xpose.msra.mxu0 0
        %416 = vmatprep.subr.bf16.mxu0 0
        %417 = vmatpush1.bf16.xpose.msra.mxu0 0
        %418 = vmatprep.subr.bf16.mxu0 0
        %419 = vmatpush1.bf16.xpose.msra.mxu0 0
        %420 = vmatprep.subr.bf16.mxu0 0
        %421 = vmatpush1.bf16.xpose.msra.mxu0 0
        %422 = vmatprep.subr.bf16.mxu0 0
        %423 = vmatpush1.bf16.xpose.msra.mxu0 0
        %424 = vmatprep.subr.bf16.mxu0 0
        %425 = vmatpush1.bf16.xpose.msra.mxu0 %v408
        %426 = vmatprep.subr.bf16.mxu0 0
        %427 = vmatpush2.bf16.xpose.msra.mxu0 0
        %428 = vmatprep.subr.bf16.mxu0 0
        %429 = vmatpush2.bf16.xpose.msra.mxu0 0
        %430 = vmatprep.subr.bf16.mxu0 0
        %431 = vmatpush2.bf16.xpose.msra.mxu0 0
        %432 = vmatprep.subr.bf16.mxu0 0
        %433 = vmatpush2.bf16.xpose.msra.mxu0 0
        %434 = vmatprep.subr.bf16.mxu0 0
        %435 = vmatpush2.bf16.xpose.msra.mxu0 0
        %436 = vmatprep.subr.bf16.mxu0 0
        %437 = vmatpush2.bf16.xpose.msra.mxu0 0
        %438 = vmatprep.subr.bf16.mxu0 0
        %439 = vmatpush2.bf16.xpose.msra.mxu0 0
        %440 = vmatprep.subr.bf16.mxu0 0
        %441 = vmatpush2.bf16.xpose.msra.mxu0 0
        %442 = vmatprep.mubr.bf16.mxu0 0
        %443 = vmatmul.mubr.bf16.gmra.mxu0 %v405
        %v444 = vpop.f32.mrf.mxu0
        %v445 = vadd.f32 0.0, %v444
        %v446 = vpop.f32.mrf.mxu0
        %v447 = vpop.f32.mrf.mxu0
        %v448 = vpop.f32.mrf.mxu0
        %449 = vdwg.mxu0
        %v451 = vsel %vm311, %v294, 0
        %v454 = vsel %vm311, %v302, 0
        %456 = vmatprep.subr.bf16.mxu0 0
        %457 = vmatpush1.bf16.xpose.msra.mxu0 0
        %458 = vmatprep.subr.bf16.mxu0 0
        %459 = vmatpush1.bf16.xpose.msra.mxu0 0
        %460 = vmatprep.subr.bf16.mxu0 0
        %461 = vmatpush1.bf16.xpose.msra.mxu0 0
        %462 = vmatprep.subr.bf16.mxu0 0
        %463 = vmatpush1.bf16.xpose.msra.mxu0 0
        %464 = vmatprep.subr.bf16.mxu0 0
        %465 = vmatpush1.bf16.xpose.msra.mxu0 0
        %466 = vmatprep.subr.bf16.mxu0 0
        %467 = vmatpush1.bf16.xpose.msra.mxu0 0
        %468 = vmatprep.subr.bf16.mxu0 0
        %469 = vmatpush1.bf16.xpose.msra.mxu0 0
        %470 = vmatprep.subr.bf16.mxu0 0
        %471 = vmatpush1.bf16.xpose.msra.mxu0 %v454
        %472 = vmatprep.subr.bf16.mxu0 0
        %473 = vmatpush2.bf16.xpose.msra.mxu0 0
        %474 = vmatprep.subr.bf16.mxu0 0
        %475 = vmatpush2.bf16.xpose.msra.mxu0 0
        %476 = vmatprep.subr.bf16.mxu0 0
        %477 = vmatpush2.bf16.xpose.msra.mxu0 0
        %478 = vmatprep.subr.bf16.mxu0 0
        %479 = vmatpush2.bf16.xpose.msra.mxu0 0
        %480 = vmatprep.subr.bf16.mxu0 0
        %481 = vmatpush2.bf16.xpose.msra.mxu0 0
        %482 = vmatprep.subr.bf16.mxu0 0
        %483 = vmatpush2.bf16.xpose.msra.mxu0 0
        %484 = vmatprep.subr.bf16.mxu0 0
        %485 = vmatpush2.bf16.xpose.msra.mxu0 0
        %486 = vmatprep.subr.bf16.mxu0 0
        %487 = vmatpush2.bf16.xpose.msra.mxu0 0
        %488 = vmatprep.mubr.bf16.mxu0 0
        %489 = vmatmul.mubr.bf16.gmra.mxu0 %v451
        %v490 = vpop.f32.mrf.mxu0
        %v491 = vadd.f32 0.0, %v490
        %v492 = vpop.f32.mrf.mxu0
        %v493 = vpop.f32.mrf.mxu0
        %v494 = vpop.f32.mrf.mxu0
        %495 = vdwg.mxu0
        %v496 = vsel %vm311, %v353, -inf
        %497 = vmax.xlane.f32.xlu0 %v496
        %v498 = vpop.xlane.xlu0 %497
        %v499 = vsel %vm311, %v399, -inf
        %500 = vmax.xlane.f32.xlu0 %v499
        %v501 = vpop.xlane.xlu0 %500
        %v502 = vsel %vm311, %v445, -inf
        %503 = vmax.xlane.f32.xlu0 %v502
        %v504 = vpop.xlane.xlu0 %503
        %v505 = vsel %vm311, %v491, -inf
        %506 = vmax.xlane.f32.xlu0 %v505
        %v507 = vpop.xlane.xlu0 %506
        %v508 = vsub.f32 %v353, %v498
        %v509 = vsub.f32 %v399, %v501
        %v510 = vsub.f32 %v445, %v504
        %v511 = vsub.f32 %v491, %v507
        %v512 = vmul.f32 %v508, 1.442695
        %v513 = vpow.pop %v512
        %v514 = vmul.f32 %v509, 1.442695
        %v515 = vpow.pop %v514
        %v516 = vmul.f32 %v510, 1.442695
        %v517 = vpow.pop %v516
        %v518 = vmul.f32 %v511, 1.442695
        %v519 = vpow.pop %v518
        %v520 = vsel %vm311, %v513, 0.0
        %521 = vadd.xlane.f32.xlu0 %v520
        %v522 = vpop.xlane.xlu0 %521
        %v523 = vsel %vm311, %v515, 0.0
        %524 = vadd.xlane.f32.xlu0 %v523
        %v525 = vpop.xlane.xlu0 %524
        %v526 = vsel %vm311, %v517, 0.0
        %527 = vadd.xlane.f32.xlu0 %v526
        %v528 = vpop.xlane.xlu0 %527
        %v529 = vsel %vm311, %v519, 0.0
        %530 = vadd.xlane.f32.xlu0 %v529
        %v531 = vpop.xlane.xlu0 %530
        %v532 = vrcp.pop %v522
        %v533 = vrcp.pop %v525
        %v534 = vrcp.pop %v528
        %v535 = vrcp.pop %v531
        %v536 = vmul.f32 %v513, %v532
        %v537 = vmul.f32 %v515, %v533
        %v538 = vmul.f32 %v517, %v534
        %v539 = vmul.f32 %v519, %v535
        %540 = vst.msk [vmem:[%s245] sm:$0xff] %vm311, %v536
        %541 = vst.msk [vmem:[%s245 + $0x8] sm:$0xff] %vm311, %v537
        %542 = vst.msk [vmem:[%s245 + $0x10] sm:$0xff] %vm311, %v538
        %543 = vst.msk [vmem:[%s245 + $0x18] sm:$0xff] %vm311, %v539
        %v544 = vpack.c.bf16 %v536, %v536
        %v545 = vpack.c.bf16 %v537, %v537
        %v546 = vpack.c.bf16 %v538, %v538
        %v547 = vpack.c.bf16 %v539, %v539
        %v549 = vsel %vm311, %v544, 0
        %vm551 = vcmask 1043456
        %v553 = vsel %vm551, %v307, 0
        %555 = vmatprep.subr.bf16.mxu0 0
        %556 = vmatpush1.bf16.msra.mxu0 0
        %557 = vmatprep.subr.bf16.mxu0 0
        %558 = vmatpush1.bf16.msra.mxu0 0
        %559 = vmatprep.subr.bf16.mxu0 0
        %560 = vmatpush1.bf16.msra.mxu0 0
        %561 = vmatprep.subr.bf16.mxu0 0
        %562 = vmatpush1.bf16.msra.mxu0 0
        %563 = vmatprep.subr.bf16.mxu0 0
        %564 = vmatpush1.bf16.msra.mxu0 0
        %565 = vmatprep.subr.bf16.mxu0 0
        %566 = vmatpush1.bf16.msra.mxu0 0
        %567 = vmatprep.subr.bf16.mxu0 0
        %568 = vmatpush1.bf16.msra.mxu0 0
        %569 = vmatprep.subr.bf16.mxu0 0
        %570 = vmatpush1.bf16.msra.mxu0 %v553
        %571 = vmatprep.subr.bf16.mxu0 0
        %572 = vmatpush2.bf16.msra.mxu0 0
        %573 = vmatprep.subr.bf16.mxu0 0
        %574 = vmatpush2.bf16.msra.mxu0 0
        %575 = vmatprep.subr.bf16.mxu0 0
        %576 = vmatpush2.bf16.msra.mxu0 0
        %577 = vmatprep.subr.bf16.mxu0 0
        %578 = vmatpush2.bf16.msra.mxu0 0
        %579 = vmatprep.subr.bf16.mxu0 0
        %580 = vmatpush2.bf16.msra.mxu0 0
        %581 = vmatprep.subr.bf16.mxu0 0
        %582 = vmatpush2.bf16.msra.mxu0 0
        %583 = vmatprep.subr.bf16.mxu0 0
        %584 = vmatpush2.bf16.msra.mxu0 0
        %585 = vmatprep.subr.bf16.mxu0 0
        %586 = vmatpush2.bf16.msra.mxu0 0
        %587 = vmatprep.mubr.bf16.mxu0 0
        %588 = vmatmul.mubr.bf16.gmra.mxu0 %v549
        %v589 = vpop.f32.mrf.mxu0
        %v590 = vadd.f32 0.0, %v589
        %v591 = vpop.f32.mrf.mxu0
        %v592 = vpop.f32.mrf.mxu0
        %v593 = vpop.f32.mrf.mxu0
        %594 = vdwg.mxu0
        %v596 = vsel %vm311, %v545, 0
        %v599 = vsel %vm551, %v308, 0
        %601 = vmatprep.subr.bf16.mxu0 0
        %602 = vmatpush1.bf16.msra.mxu0 0
        %603 = vmatprep.subr.bf16.mxu0 0
        %604 = vmatpush1.bf16.msra.mxu0 0
        %605 = vmatprep.subr.bf16.mxu0 0
        %606 = vmatpush1.bf16.msra.mxu0 0
        %607 = vmatprep.subr.bf16.mxu0 0
        %608 = vmatpush1.bf16.msra.mxu0 0
        %609 = vmatprep.subr.bf16.mxu0 0
        %610 = vmatpush1.bf16.msra.mxu0 0
        %611 = vmatprep.subr.bf16.mxu0 0
        %612 = vmatpush1.bf16.msra.mxu0 0
        %613 = vmatprep.subr.bf16.mxu0 0
        %614 = vmatpush1.bf16.msra.mxu0 0
        %615 = vmatprep.subr.bf16.mxu0 0
        %616 = vmatpush1.bf16.msra.mxu0 %v599
        %617 = vmatprep.subr.bf16.mxu0 0
        %618 = vmatpush2.bf16.msra.mxu0 0
        %619 = vmatprep.subr.bf16.mxu0 0
        %620 = vmatpush2.bf16.msra.mxu0 0
        %621 = vmatprep.subr.bf16.mxu0 0
        %622 = vmatpush2.bf16.msra.mxu0 0
        %623 = vmatprep.subr.bf16.mxu0 0
        %624 = vmatpush2.bf16.msra.mxu0 0
        %625 = vmatprep.subr.bf16.mxu0 0
        %626 = vmatpush2.bf16.msra.mxu0 0
        %627 = vmatprep.subr.bf16.mxu0 0
        %628 = vmatpush2.bf16.msra.mxu0 0
        %629 = vmatprep.subr.bf16.mxu0 0
        %630 = vmatpush2.bf16.msra.mxu0 0
        %631 = vmatprep.subr.bf16.mxu0 0
        %632 = vmatpush2.bf16.msra.mxu0 0
        %633 = vmatprep.mubr.bf16.mxu0 0
        %634 = vmatmul.mubr.bf16.gmra.mxu0 %v596
        %v635 = vpop.f32.mrf.mxu0
        %v636 = vadd.f32 0.0, %v635
        %v637 = vpop.f32.mrf.mxu0
        %v638 = vpop.f32.mrf.mxu0
        %v639 = vpop.f32.mrf.mxu0
        %640 = vdwg.mxu0
        %v642 = vsel %vm311, %v546, 0
        %v645 = vsel %vm551, %v309, 0
        %647 = vmatprep.subr.bf16.mxu0 0
        %648 = vmatpush1.bf16.msra.mxu0 0
        %649 = vmatprep.subr.bf16.mxu0 0
        %650 = vmatpush1.bf16.msra.mxu0 0
        %651 = vmatprep.subr.bf16.mxu0 0
        %652 = vmatpush1.bf16.msra.mxu0 0
        %653 = vmatprep.subr.bf16.mxu0 0
        %654 = vmatpush1.bf16.msra.mxu0 0
        %655 = vmatprep.subr.bf16.mxu0 0
        %656 = vmatpush1.bf16.msra.mxu0 0
        %657 = vmatprep.subr.bf16.mxu0 0
        %658 = vmatpush1.bf16.msra.mxu0 0
        %659 = vmatprep.subr.bf16.mxu0 0
        %660 = vmatpush1.bf16.msra.mxu0 0
        %661 = vmatprep.subr.bf16.mxu0 0
        %662 = vmatpush1.bf16.msra.mxu0 %v645
        %663 = vmatprep.subr.bf16.mxu0 0
        %664 = vmatpush2.bf16.msra.mxu0 0
        %665 = vmatprep.subr.bf16.mxu0 0
        %666 = vmatpush2.bf16.msra.mxu0 0
        %667 = vmatprep.subr.bf16.mxu0 0
        %668 = vmatpush2.bf16.msra.mxu0 0
        %669 = vmatprep.subr.bf16.mxu0 0
        %670 = vmatpush2.bf16.msra.mxu0 0
        %671 = vmatprep.subr.bf16.mxu0 0
        %672 = vmatpush2.bf16.msra.mxu0 0
        %673 = vmatprep.subr.bf16.mxu0 0
        %674 = vmatpush2.bf16.msra.mxu0 0
        %675 = vmatprep.subr.bf16.mxu0 0
        %676 = vmatpush2.bf16.msra.mxu0 0
        %677 = vmatprep.subr.bf16.mxu0 0
        %678 = vmatpush2.bf16.msra.mxu0 0
        %679 = vmatprep.mubr.bf16.mxu0 0
        %680 = vmatmul.mubr.bf16.gmra.mxu0 %v642
        %v681 = vpop.f32.mrf.mxu0
        %v682 = vadd.f32 0.0, %v681
        %v683 = vpop.f32.mrf.mxu0
        %v684 = vpop.f32.mrf.mxu0
        %v685 = vpop.f32.mrf.mxu0
        %686 = vdwg.mxu0
        %v688 = vsel %vm311, %v547, 0
        %v691 = vsel %vm551, %v310, 0
        %693 = vmatprep.subr.bf16.mxu0 0
        %694 = vmatpush1.bf16.msra.mxu0 0
        %695 = vmatprep.subr.bf16.mxu0 0
        %696 = vmatpush1.bf16.msra.mxu0 0
        %697 = vmatprep.subr.bf16.mxu0 0
        %698 = vmatpush1.bf16.msra.mxu0 0
        %699 = vmatprep.subr.bf16.mxu0 0
        %700 = vmatpush1.bf16.msra.mxu0 0
        %701 = vmatprep.subr.bf16.mxu0 0
        %702 = vmatpush1.bf16.msra.mxu0 0
        %703 = vmatprep.subr.bf16.mxu0 0
        %704 = vmatpush1.bf16.msra.mxu0 0
        %705 = vmatprep.subr.bf16.mxu0 0
        %706 = vmatpush1.bf16.msra.mxu0 0
        %707 = vmatprep.subr.bf16.mxu0 0
        %708 = vmatpush1.bf16.msra.mxu0 %v691
        %709 = vmatprep.subr.bf16.mxu0 0
        %710 = vmatpush2.bf16.msra.mxu0 0
        %711 = vmatprep.subr.bf16.mxu0 0
        %712 = vmatpush2.bf16.msra.mxu0 0
        %713 = vmatprep.subr.bf16.mxu0 0
        %714 = vmatpush2.bf16.msra.mxu0 0
        %715 = vmatprep.subr.bf16.mxu0 0
        %716 = vmatpush2.bf16.msra.mxu0 0
        %717 = vmatprep.subr.bf16.mxu0 0
        %718 = vmatpush2.bf16.msra.mxu0 0
        %719 = vmatprep.subr.bf16.mxu0 0
        %720 = vmatpush2.bf16.msra.mxu0 0
        %721 = vmatprep.subr.bf16.mxu0 0
        %722 = vmatpush2.bf16.msra.mxu0 0
        %723 = vmatprep.subr.bf16.mxu0 0
        %724 = vmatpush2.bf16.msra.mxu0 0
        %725 = vmatprep.mubr.bf16.mxu0 0
        %726 = vmatmul.mubr.bf16.gmra.mxu0 %v688
        %v727 = vpop.f32.mrf.mxu0
        %v728 = vadd.f32 0.0, %v727
        %v729 = vpop.f32.mrf.mxu0
        %v730 = vpop.f32.mrf.mxu0
        %v731 = vpop.f32.mrf.mxu0
        %732 = vdwg.mxu0
        %733 = vst.msk [vmem:[%s281] sm:$0xff] %vm311, %v590
        %734 = vst.msk [vmem:[%s281 + $0x8] sm:$0xff] %vm311, %v636
        %735 = vst.msk [vmem:[%s281 + $0x10] sm:$0xff] %vm311, %v682
        %736 = vst.msk [vmem:[%s281 + $0x18] sm:$0xff] %vm311, %v728
        %s737 = sand.u32 %s121, 1
        %s738 = scalar_lea.sflag [#allocation3], %s737
        %s739 = sand.u32 %s121, 1
        %s740 = smul.addr %s739, 32
        %s741 = scalar_lea.vmem [#allocation2], %s740
        %p742 = scmp.lt.s32.totalorder %s23, 1
        %s743 = scalar_select %p742, %s23, 1
        %p744 = scmp.lt.s32.totalorder %s24, 0
        %s745 = scalar_select %p744, %s24, 0
        %s746 = smul.addr %s743, 4
        %s747 = sadd.s32 %s745, %s746
        %s748 = smul.addr %s747, 8
        %s749 = scalar_lea.vmem %s4, %s748
        // Predicated region
        $region33: #{multi_head_attention.8} parent=31 // pred_check
          %p750 = pneg %p131
        $region34: #{multi_head_attention.8} parent=31 // pred_check_branch
          %752 = sbr.rel (%p750) target = $region36
        $region35: #{multi_head_attention.8} parent=31 // pred_region
          %s754 = ssub.s32 512, 512
          %755 = vsyncadd %s738, %s754
          %s756 = smul.addr %s23, 4
          %s757 = sadd.s32 %s24, %s756
          %s758 = smul.addr %s757, 128
          %s759 = scalar_lea.hbm %s3, %s758
          %s760 = sshll.u32 %s741, 4
          %s761 = int_to_ptr.vmem [resolvable:$true] %s760
          %766 = dma.vmem_to_hbm [thread:$0]  %s761, 512, %s759, %s738, 128, 128, 8
        $region36: #{multi_head_attention.8} parent=31 // pred_fallthru
          _
        // Predicated region
        $region37: #{multi_head_attention.8} parent=31 // pred_check
          %p767 = pneg %p159
        $region38: #{multi_head_attention.8} parent=31 // pred_check_branch
          %769 = sbr.rel (%p767) target = $region40
        $region39: #{multi_head_attention.8} parent=31 // pred_region
          _
        $region40: #{multi_head_attention.8} parent=31 // pred_fallthru
          _
      $region32: #{multi_head_attention.8} parent=5 // pred_fallthru
        _
      %p770 = scmp.le.s32.totalorder 2, %s14
      // Predicated region
      $region41: #{multi_head_attention.8} parent=5 // pred_check
        %p771 = pneg %p770
      $region42: #{multi_head_attention.8} parent=5 // pred_check_branch
        %773 = sbr.rel (%p771) target = $region44
      $region43: #{multi_head_attention.8} parent=5 // pred_region
        %s774 = ssub.s32 %s14, 2
        // Predicated region
        $region45: #{multi_head_attention.8} parent=43 // pred_check
          %p775 = pneg %p137
        $region46: #{multi_head_attention.8} parent=43 // pred_check_branch
          %777 = sbr.rel (%p775) target = $region48
        $region47: #{multi_head_attention.8} parent=43 // pred_region
          %s778 = sand.u32 %s122, 1
          %s779 = scalar_lea.sflag [#allocation3], %s778
          %s780 = sand.u32 %s122, 1
          %s781 = smul.addr %s780, 32
          %s782 = scalar_lea.vmem [#allocation2], %s781
          %783 = dma.done %s779, 512
        $region48: #{multi_head_attention.8} parent=43 // pred_fallthru
          _
        // Predicated region
        $region49: #{multi_head_attention.8} parent=43 // pred_check
          %p784 = pneg %p165
        $region50: #{multi_head_attention.8} parent=43 // pred_check_branch
          %786 = sbr.rel (%p784) target = $region52
        $region51: #{multi_head_attention.8} parent=43 // pred_region
          %p787 = scmp.lt.s32.totalorder %s25, 1
          %s788 = scalar_select %p787, %s25, 1
          %p789 = scmp.lt.s32.totalorder %s26, 0
          %s790 = scalar_select %p789, %s26, 0
          %s791 = smul.addr %s788, 4
          %s792 = sadd.s32 %s790, %s791
          %s793 = smul.addr %s792, 8
          %s794 = scalar_lea.vmem %s4, %s793
        $region52: #{multi_head_attention.8} parent=43 // pred_fallthru
          _
      $region44: #{multi_head_attention.8} parent=5 // pred_fallthru
        _
    $region6: #{multi_head_attention.8} parent=1 // loop_footer
      %s18 = sadd.s32 1, %s14
    $region7: #{multi_head_attention.8} parent=1 // loop_footer_branch
      %13 = sbr.rel target = $region3
    $region8: #{multi_head_attention.8} parent=1 // loop_exit
      _
    %795 = vsyncpa [#allocation3], 1
    %s796 = scalar_lea.sflag [#allocation3], 1
    %797 = vsyncpa %s796, 1

</llo_original>
